<compile_context>
chip_gen: v7x
topology: tpu7x:2x2x1
jax: 0.10.0
libtpu: 0.0.40
codegen_flags: <defaults>
</compile_context>

<pallas_src>
import functools

import jax
import jax.numpy as jnp
from jax.experimental import pallas as pl
from jax.experimental.pallas import tpu as pltpu


def policy_net_kernel(state_dim, hidden_dim, x_ref, w1b_ref, w2b_ref, out_ref):
    # x_ref   : (TB, S)       activations, blocked over batch
    # w1b_ref : (S+1, H)      rows [0:S) = W1, row S = b1   (VMEM-resident)
    # w2b_ref : (H+1, A)      rows [0:H) = W2, row H = b2   (VMEM-resident)
    # out_ref : (A, TB)       transposed output -> lane-dense stores
    x = x_ref[...]
    w1b = w1b_ref[...]
    h = jnp.dot(x, w1b[:state_dim, :], preferred_element_type=jnp.float32)
    h = h + w1b[state_dim:, :]          # broadcast b1 add (free VPU filler)
    h = jnp.maximum(h, 0.0)             # ReLU

    w2b = w2b_ref[...]
    logits = jnp.dot(h, w2b[:hidden_dim, :], preferred_element_type=jnp.float32)
    logits = logits + w2b[hidden_dim:, :]

    # numerically-stable row softmax (dim=1) with an EXACT divide so rows sum to 1
    m = jnp.max(logits, axis=1, keepdims=True)
    e = jnp.exp(logits - m)
    denom = jnp.sum(e, axis=1, keepdims=True)
    probs = e / denom                   # (TB, A)

    # transpose (TB, A) -> (A, TB): output last dim is the batch tile, so the
    # store is 128-lane dense instead of a 6/128-lane masked vst.msk.
    out_ref[...] = probs.T.astype(out_ref.dtype)


def policy_net_forward(x, w1, b1, w2, b2, *, block_b=2048, out_dtype=jnp.float32):
    batch, state_dim = x.shape
    hidden_dim, action_dim = w2.shape

    # Fold biases into the (tiny) weight operands -> 3 kernel operands total.
    w1b = jnp.concatenate([w1, b1.reshape(1, hidden_dim)], axis=0).astype(jnp.float32)
    w2b = jnp.concatenate([w2, b2.reshape(1, action_dim)], axis=0).astype(jnp.float32)

    # Batch tile selection.  The transposed output block (A, tb) requires tb to
    # be a multiple of 128 or equal to the full (padded) batch.
    if batch <= block_b:
        if batch % 256 == 0 and batch >= 256:
            tb = batch // 2        # >= 2 grid steps so both v7x TCs participate
        else:
            tb = batch             # single step; blocks == full array dims
    else:
        tb = block_b               # block_b is a multiple of 128

    padded = pl.cdiv(batch, tb) * tb
    x_in = x.astype(jnp.float32)
    if padded != batch:
        # Only hit when batch > block_b and not tile-divisible (rare corner case).
        x_in = jnp.pad(x_in, ((0, padded - batch), (0, 0)))
    grid = (padded // tb,)

    bytes_accessed = int(
        x_in.size * 4 + w1b.size * 4 + w2b.size * 4
        + padded * action_dim * jnp.dtype(out_dtype).itemsize
    )
    cost = pl.CostEstimate(
        flops=2 * padded * (state_dim * hidden_dim + hidden_dim * action_dim)
        + padded * (hidden_dim + action_dim),
        transcendentals=padded * action_dim,    # exp in the softmax
        bytes_accessed=bytes_accessed,
    )

    out_t = pl.pallas_call(
        functools.partial(policy_net_kernel, state_dim, hidden_dim),
        out_shape=jax.ShapeDtypeStruct((action_dim, padded), out_dtype),
        grid=grid,
        in_specs=[
            # activations: blocked over batch (dominant HBM stream)
            pl.BlockSpec((tb, state_dim), lambda i: (i, 0)),
            # weights: constant block index -> stay VMEM-resident, no re-DMA
            pl.BlockSpec((state_dim + 1, hidden_dim), lambda i: (0, 0)),
            pl.BlockSpec((hidden_dim + 1, action_dim), lambda i: (0, 0)),
        ],
        # transposed output: lane axis = batch tile -> unmasked 128-lane stores
        out_specs=pl.BlockSpec((action_dim, tb), lambda i: (0, i)),
        compiler_params=pltpu.CompilerParams(
            dimension_semantics=("parallel",),   # megacore / dual-TC batch split
        ),
        cost_estimate=cost,
    )(x_in, w1b, w2b)

    # slice off padding and transpose the small (A, B) result back to (B, A)
    return out_t[:, :batch].T
    # TODO(synk): at toy sizes (8x4x32x6) plain XLA fusion likely beats the Pallas
    # wrapper's fixed ~0.35us/step overhead; this kernel targets large-batch use.


def init_params(key, state_dim, hidden_dim, action_dim):
    # nn.Linear default init: U(-1/sqrt(fan_in), 1/sqrt(fan_in)) for W and b.
    k1, k2, k3, k4 = jax.random.split(key, 4)
    bound1 = 1.0 / jnp.sqrt(state_dim)
    bound2 = 1.0 / jnp.sqrt(hidden_dim)
    w1 = jax.random.uniform(k1, (state_dim, hidden_dim), jnp.float32, -bound1, bound1)
    b1 = jax.random.uniform(k2, (1, hidden_dim), jnp.float32, -bound1, bound1)
    w2 = jax.random.uniform(k3, (hidden_dim, action_dim), jnp.float32, -bound2, bound2)
    b2 = jax.random.uniform(k4, (1, action_dim), jnp.float32, -bound2, bound2)
    return w1, b1, w2, b2


def reference_forward(x, w1, b1, w2, b2):
    h = jnp.maximum(x @ w1 + b1, 0.0)
    logits = h @ w2 + b2
    return jax.nn.softmax(logits, axis=1)


if __name__ == "__main__":
    batch, state_dim, hidden_dim, action_dim = 8, 4, 32, 6

    key = jax.random.PRNGKey(0)
    kx, kp = jax.random.split(key)
    x = jax.random.normal(kx, (batch, state_dim), jnp.float32)
    w1, b1, w2, b2 = init_params(kp, state_dim, hidden_dim, action_dim)

    out = policy_net_forward(x, w1, b1, w2, b2)
    out = jax.block_until_ready(out)

    ref = reference_forward(x, w1, b1, w2, b2)
    assert out.shape == (batch, action_dim)
    # f32 end-to-end; tolerance only covers TPU default matmul precision.
    assert jnp.allclose(out, ref, atol=5e-3, rtol=1e-2)
    # exact softmax divide -> rows sum to 1 to f32 rounding
    assert jnp.allclose(jnp.sum(out, axis=1), jnp.ones((batch,)), atol=1e-4)

    print("KERNEL_OK")
</pallas_src>

<mosaic_0001>
module attributes {stable_mosaic.version = 11 : i64} {
  func.func @policy_net_kernel(%arg0: i32, %arg1: memref<8x4xf32, #tpu.memory_space<vmem>>, %arg2: memref<5x32xf32, #tpu.memory_space<vmem>>, %arg3: memref<33x6xf32, #tpu.memory_space<vmem>>, %arg4: memref<6x8xf32, #tpu.memory_space<vmem>>) attributes {dimension_semantics = [#tpu.dimension_semantics<parallel>], iteration_bounds = array<i64: 1>, scalar_prefetch = 0 : i64, scratch_operands = 0 : i64, tpu.core_type = #tpu.core_type<tc>, window_params = [{transform_indices = @transform_0, window_bounds = array<i64: 8, 4>}, {pipeline_mode = #tpu.pipeline_mode<synchronous>, transform_indices = @transform_1, window_bounds = array<i64: 5, 32>}, {pipeline_mode = #tpu.pipeline_mode<synchronous>, transform_indices = @transform_2, window_bounds = array<i64: 33, 6>}, {transform_indices = @transform_3, window_bounds = array<i64: 6, 8>}]} {
    %c0 = arith.constant 0 : index
    %c0_0 = arith.constant 0 : index
    %0 = vector.load %arg1[%c0, %c0_0] : memref<8x4xf32, #tpu.memory_space<vmem>>, vector<8x4xf32>
    %c0_1 = arith.constant 0 : index
    %c0_2 = arith.constant 0 : index
    %1 = vector.load %arg2[%c0_1, %c0_2] : memref<5x32xf32, #tpu.memory_space<vmem>>, vector<5x32xf32>
    %2 = vector.extract_strided_slice %1 {offsets = [0, 0], sizes = [4, 32], strides = [1, 1]} : vector<5x32xf32> to vector<4x32xf32>
    %cst = arith.constant dense<0.000000e+00> : vector<8x32xf32>
    %3 = tpu.matmul %0, %2, %cst {dimension_numbers = #tpu.dot_dimension_numbers<[1], [0], [0], [1], [0, 0, 1, 1], [], []>} : vector<8x4xf32>, vector<4x32xf32>, vector<8x32xf32> -> vector<8x32xf32>
    %4 = vector.extract_strided_slice %1 {offsets = [4, 0], sizes = [1, 32], strides = [1, 1]} : vector<5x32xf32> to vector<1x32xf32>
    %5 = vector.broadcast %4 : vector<1x32xf32> to vector<8x32xf32>
    %6 = arith.addf %3, %5 : vector<8x32xf32>
    %cst_3 = arith.constant 0.000000e+00 : f32
    %7 = vector.broadcast %cst_3 : f32 to vector<8x32xf32>
    %8 = arith.maximumf %6, %7 : vector<8x32xf32>
    %c0_4 = arith.constant 0 : index
    %c0_5 = arith.constant 0 : index
    %9 = vector.load %arg3[%c0_4, %c0_5] : memref<33x6xf32, #tpu.memory_space<vmem>>, vector<33x6xf32>
    %10 = vector.extract_strided_slice %9 {offsets = [0, 0], sizes = [32, 6], strides = [1, 1]} : vector<33x6xf32> to vector<32x6xf32>
    %cst_6 = arith.constant dense<0.000000e+00> : vector<8x6xf32>
    %11 = tpu.matmul %8, %10, %cst_6 {dimension_numbers = #tpu.dot_dimension_numbers<[1], [0], [0], [1], [0, 0, 1, 1], [], []>} : vector<8x32xf32>, vector<32x6xf32>, vector<8x6xf32> -> vector<8x6xf32>
    %12 = vector.extract_strided_slice %9 {offsets = [32, 0], sizes = [1, 6], strides = [1, 1]} : vector<33x6xf32> to vector<1x6xf32>
    %13 = vector.broadcast %12 : vector<1x6xf32> to vector<8x6xf32>
    %14 = arith.addf %11, %13 : vector<8x6xf32>
    %cst_7 = arith.constant dense<0xFF800000> : vector<8xf32>
    %15 = vector.multi_reduction <maximumf>, %14, %cst_7 [1] : vector<8x6xf32> to vector<8xf32>
    %16 = vector.shape_cast %15 : vector<8xf32> to vector<8x1xf32>
    %17 = vector.broadcast %16 : vector<8x1xf32> to vector<8x6xf32>
    %18 = arith.subf %14, %17 : vector<8x6xf32>
    %19 = math.exp %18 : vector<8x6xf32>
    %cst_8 = arith.constant dense<0.000000e+00> : vector<8xf32>
    %20 = vector.multi_reduction <add>, %19, %cst_8 [1] : vector<8x6xf32> to vector<8xf32>
    %21 = vector.shape_cast %20 : vector<8xf32> to vector<8x1xf32>
    %22 = vector.broadcast %21 : vector<8x1xf32> to vector<8x6xf32>
    %23 = arith.divf %19, %22 : vector<8x6xf32>
    %24 = tpu.transpose %23, [1, 0] : vector<8x6xf32> -> vector<6x8xf32>
    %c0_9 = arith.constant 0 : index
    %c0_10 = arith.constant 0 : index
    %25 = vector.load %arg4[%c0_9, %c0_10] : memref<6x8xf32, #tpu.memory_space<vmem>>, vector<6x8xf32>
    tpu.vector_store %arg4[%c0_9, %c0_10], %24 {strides = array<i32>} : memref<6x8xf32, #tpu.memory_space<vmem>>, vector<6x8xf32>,
    return
  }
  func.func @transform_0(%arg0: i32) -> (i32, i32) {
    %c0_i32 = arith.constant 0 : i32
    %c0_i32_0 = arith.constant 0 : i32
    return %arg0, %c0_i32 : i32, i32
  }
  func.func @transform_1(%arg0: i32) -> (i32, i32) {
    %c0_i32 = arith.constant 0 : i32
    %c0_i32_0 = arith.constant 0 : i32
    %c0_i32_1 = arith.constant 0 : i32
    return %c0_i32, %c0_i32_0 : i32, i32
  }
  func.func @transform_2(%arg0: i32) -> (i32, i32) {
    %c0_i32 = arith.constant 0 : i32
    %c0_i32_0 = arith.constant 0 : i32
    %c0_i32_1 = arith.constant 0 : i32
    return %c0_i32, %c0_i32_0 : i32, i32
  }
  func.func @transform_3(%arg0: i32) -> (i32, i32) {
    %c0_i32 = arith.constant 0 : i32
    %c0_i32_0 = arith.constant 0 : i32
    return %c0_i32, %arg0 : i32, i32
  }
}

</mosaic_0001>

<llo_original>
// kernel: tpu_custom_call.1
$region0: #{tpu_custom_call.1}
  #allocation0 [shape = 'u32[]', space=smem, size = 0x4, offset = 0x4, fixed_abs, tag = 'smem constant byte address 0x4 - core index']
  #allocation1 [shape = 'u32[144,128]{1,0:T(1,128)}', space=vmem, size = 0x12000, scoped, tag = 'internal scratch']
  %s0 = inlined_call_operand.vmem [shape: f32[8,4], index: 0, kind: input, shape index: {}]
  %s1 = inlined_call_operand.vmem [shape: f32[5,32], index: 1, kind: input, shape index: {}]
  %s2 = inlined_call_operand.vmem [shape: f32[33,6], index: 2, kind: input, shape index: {}]
  %s3 = inlined_call_operand.hbm [shape: f32[6,8], index: 3, kind: output, shape index: {}]
  %s4 = sld [smem:[#allocation0]]
  $region22: #{tpu_custom_call.1} parent=0
    _
  %s6 = ssub.s32 1, %s4
  %s7 = scalar_select 0, %s6, %s4
  $region1: #{tpu_custom_call.1} parent=0
    #allocation2 [shape = 'u8[4096]{0}', space=vmem, size = 0x1000, scoped, tag = 'output window, operand 0, single buffered']
    #allocation3 [shape = 's32[1]{0}', space=sflag, size = 0x4, scoped, tag = 'scoped memory for tpu_custom_call.1']
    %8 = vsyncpa [#allocation3], 0
    // Predicated region
    $region2: #{tpu_custom_call.1} parent=1 // pred_check
      _
    $region3: #{tpu_custom_call.1} parent=1 // pred_check_branch
      %10 = sbr.rel (0) target = $region5
    $region4: #{tpu_custom_call.1} parent=1 // pred_region
      _
    $region5: #{tpu_custom_call.1} parent=1 // pred_fallthru
      _
    // Predicated region
    $region6: #{tpu_custom_call.1} parent=1 // pred_check
      _
    $region7: #{tpu_custom_call.1} parent=1 // pred_check_branch
      %12 = sbr.rel (0) target = $region9
    $region8: #{tpu_custom_call.1} parent=1 // pred_region
      _
    $region9: #{tpu_custom_call.1} parent=1 // pred_fallthru
      _
    // Predicated region
    $region10: #{tpu_custom_call.1} parent=1 // pred_check
      _
    $region11: #{tpu_custom_call.1} parent=1 // pred_check_branch
      %14 = sbr.rel (0) target = $region13
    $region12: #{tpu_custom_call.1} parent=1 // pred_region
      _
    $region13: #{tpu_custom_call.1} parent=1 // pred_fallthru
      _
    %v15 = vld [vmem:[%s0] sm:$0xff]
    %v16 = vld [vmem:[%s1] sm:$0x1f]
    %v17 = vlaneseq
    %v18 = vshrl.u32 %v17, 7
    %v19 = vsub.s32 4, %v18
    %v20 = vrot.slane %v16, %v19
    %vm21 = vcmask 31744
    %v23 = vsel %vm21, %v15, 0
    %vm25 = vcmask 1043456
    %v27 = vsel %vm25, %v16, 0
    %29 = vmatprep.subr.mxu0 0.0
    %30 = vmatpush1.msra.mxu0 %v27
    %31 = vmatprep.subr.mxu0 0.0
    %32 = vmatpush1.msra.mxu0 0.0
    %33 = vmatprep.subr.mxu0 0.0
    %34 = vmatpush1.msra.mxu0 0.0
    %35 = vmatprep.subr.mxu0 0.0
    %36 = vmatpush1.msra.mxu0 0.0
    %37 = vmatprep.subr.mxu0 0.0
    %38 = vmatpush1.msra.mxu0 0.0
    %39 = vmatprep.subr.mxu0 0.0
    %40 = vmatpush1.msra.mxu0 0.0
    %41 = vmatprep.subr.mxu0 0.0
    %42 = vmatpush1.msra.mxu0 0.0
    %43 = vmatprep.subr.mxu0 0.0
    %44 = vmatpush1.msra.mxu0 0.0
    %45 = vmatprep.subr.mxu0 0.0
    %46 = vmatpush1.msra.mxu0 0.0
    %47 = vmatprep.subr.mxu0 0.0
    %48 = vmatpush1.msra.mxu0 0.0
    %49 = vmatprep.subr.mxu0 0.0
    %50 = vmatpush1.msra.mxu0 0.0
    %51 = vmatprep.subr.mxu0 0.0
    %52 = vmatpush1.msra.mxu0 0.0
    %53 = vmatprep.subr.mxu0 0.0
    %54 = vmatpush1.msra.mxu0 0.0
    %55 = vmatprep.subr.mxu0 0.0
    %56 = vmatpush1.msra.mxu0 0.0
    %57 = vmatprep.subr.mxu0 0.0
    %58 = vmatpush1.msra.mxu0 0.0
    %59 = vmatprep.subr.mxu0 0.0
    %60 = vmatpush1.msra.mxu0 0.0
    %61 = vmatprep.subr.mxu0 0.0
    %62 = vmatpush1.msra.mxu0 0.0
    %63 = vmatprep.subr.mxu0 0.0
    %64 = vmatpush1.msra.mxu0 0.0
    %65 = vmatprep.subr.mxu0 0.0
    %66 = vmatpush1.msra.mxu0 0.0
    %67 = vmatprep.subr.mxu0 0.0
    %68 = vmatpush1.msra.mxu0 0.0
    %69 = vmatprep.subr.mxu0 0.0
    %70 = vmatpush1.msra.mxu0 0.0
    %71 = vmatprep.subr.mxu0 0.0
    %72 = vmatpush1.msra.mxu0 0.0
    %73 = vmatprep.subr.mxu0 0.0
    %74 = vmatpush1.msra.mxu0 0.0
    %75 = vmatprep.subr.mxu0 0.0
    %76 = vmatpush1.msra.mxu0 0.0
    %77 = vmatprep.subr.mxu0 0.0
    %78 = vmatpush1.msra.mxu0 0.0
    %79 = vmatprep.subr.mxu0 0.0
    %80 = vmatpush1.msra.mxu0 0.0
    %81 = vmatprep.subr.mxu0 0.0
    %82 = vmatpush1.msra.mxu0 0.0
    %83 = vmatprep.subr.mxu0 0.0
    %84 = vmatpush1.msra.mxu0 0.0
    %85 = vmatprep.subr.mxu0 0.0
    %86 = vmatpush1.msra.mxu0 0.0
    %87 = vmatprep.subr.mxu0 0.0
    %88 = vmatpush1.msra.mxu0 0.0
    %89 = vmatprep.subr.mxu0 0.0
    %90 = vmatpush1.msra.mxu0 0.0
    %91 = vmatprep.subr.mxu0 0.0
    %92 = vmatpush1.msra.mxu0 0.0
    %93 = vmatprep.mubr.f32.mxu0 0.0
    %94 = vmatmul.mubr.f32.gmra.mrb[0].mxu0 %v23
    %v95 = vpop.f32.mrb[0].mxu0
    %v96 = vadd.f32 %v20, %v95
    %v97 = vpop.f32.mrb[0].mxu0
    %98 = vdwg.mxu0
    %v99 = vmax.f32 %v96, 0.0
    %v100 = vld [vmem:[%s2] sm:$0xff]
    %v101 = vld [vmem:[%s2 + $0x8] sm:$0xff]
    %v102 = vld [vmem:[%s2 + $0x10] sm:$0xff]
    %v103 = vld [vmem:[%s2 + $0x18] sm:$0xff]
    %v104 = vld [vmem:[%s2 + $0x20] sm:$0x1]
    %v105 = vlaneseq
    %v106 = vshrl.u32 %v105, 7
    %v107 = vsub.s32 0, %v106
    %v108 = vrot.slane %v104, %v107
    %vm109 = vcmask 261120
    %v111 = vsel %vm109, %v99, 0
    %113 = vmatprep.subr.mxu0 0.0
    %114 = vmatpush1.msra.mxu0 %v100
    %115 = vmatprep.subr.mxu0 0.0
    %116 = vmatpush1.msra.mxu0 %v101
    %117 = vmatprep.subr.mxu0 0.0
    %118 = vmatpush1.msra.mxu0 %v102
    %119 = vmatprep.subr.mxu0 0.0
    %120 = vmatpush1.msra.mxu0 %v103
    %121 = vmatprep.subr.mxu0 0.0
    %122 = vmatpush1.msra.mxu0 0.0
    %123 = vmatprep.subr.mxu0 0.0
    %124 = vmatpush1.msra.mxu0 0.0
    %125 = vmatprep.subr.mxu0 0.0
    %126 = vmatpush1.msra.mxu0 0.0
    %127 = vmatprep.subr.mxu0 0.0
    %128 = vmatpush1.msra.mxu0 0.0
    %129 = vmatprep.subr.mxu0 0.0
    %130 = vmatpush1.msra.mxu0 0.0
    %131 = vmatprep.subr.mxu0 0.0
    %132 = vmatpush1.msra.mxu0 0.0
    %133 = vmatprep.subr.mxu0 0.0
    %134 = vmatpush1.msra.mxu0 0.0
    %135 = vmatprep.subr.mxu0 0.0
    %136 = vmatpush1.msra.mxu0 0.0
    %137 = vmatprep.subr.mxu0 0.0
    %138 = vmatpush1.msra.mxu0 0.0
    %139 = vmatprep.subr.mxu0 0.0
    %140 = vmatpush1.msra.mxu0 0.0
    %141 = vmatprep.subr.mxu0 0.0
    %142 = vmatpush1.msra.mxu0 0.0
    %143 = vmatprep.subr.mxu0 0.0
    %144 = vmatpush1.msra.mxu0 0.0
    %145 = vmatprep.subr.mxu0 0.0
    %146 = vmatpush1.msra.mxu0 0.0
    %147 = vmatprep.subr.mxu0 0.0
    %148 = vmatpush1.msra.mxu0 0.0
    %149 = vmatprep.subr.mxu0 0.0
    %150 = vmatpush1.msra.mxu0 0.0
    %151 = vmatprep.subr.mxu0 0.0
    %152 = vmatpush1.msra.mxu0 0.0
    %153 = vmatprep.subr.mxu0 0.0
    %154 = vmatpush1.msra.mxu0 0.0
    %155 = vmatprep.subr.mxu0 0.0
    %156 = vmatpush1.msra.mxu0 0.0
    %157 = vmatprep.subr.mxu0 0.0
    %158 = vmatpush1.msra.mxu0 0.0
    %159 = vmatprep.subr.mxu0 0.0
    %160 = vmatpush1.msra.mxu0 0.0
    %161 = vmatprep.subr.mxu0 0.0
    %162 = vmatpush1.msra.mxu0 0.0
    %163 = vmatprep.subr.mxu0 0.0
    %164 = vmatpush1.msra.mxu0 0.0
    %165 = vmatprep.subr.mxu0 0.0
    %166 = vmatpush1.msra.mxu0 0.0
    %167 = vmatprep.subr.mxu0 0.0
    %168 = vmatpush1.msra.mxu0 0.0
    %169 = vmatprep.subr.mxu0 0.0
    %170 = vmatpush1.msra.mxu0 0.0
    %171 = vmatprep.subr.mxu0 0.0
    %172 = vmatpush1.msra.mxu0 0.0
    %173 = vmatprep.subr.mxu0 0.0
    %174 = vmatpush1.msra.mxu0 0.0
    %175 = vmatprep.subr.mxu0 0.0
    %176 = vmatpush1.msra.mxu0 0.0
    %177 = vmatprep.mubr.f32.mxu0 0.0
    %178 = vmatmul.mubr.f32.gmra.mrb[0].mxu0 %v111
    %v179 = vpop.f32.mrb[0].mxu0
    %v180 = vadd.f32 %v108, %v179
    %v181 = vpop.f32.mrb[0].mxu0
    %182 = vdwg.mxu0
    %vm183 = vcmask 48128
    %v184 = vsel %vm183, %v180, -inf
    %185 = vmax.xlane.f32.xlu0 %v184
    %v186 = vpop.xlane.xlu0 %185
    %v187 = vsub.f32 %v180, %v186
    %v188 = vmul.f32 %v187, 1.442695
    %v189 = vpow.pop %v188
    %v190 = vsel %vm183, %v189, 0.0
    %191 = vadd.xlane.f32.xlu0 %v190
    %v192 = vpop.xlane.xlu0 %191
    %v193 = vrcp.pop %v192
    %v194 = vmul.f32 %v189, %v193
    %195 = vxpose.xlu0.b32.start [1/16] %v194, 128
    %196 = vxpose.xlu0.b32.cont [2/16] 0.0, 128
    %197 = vxpose.xlu0.b32.cont [3/16] 0.0, 128
    %198 = vxpose.xlu0.b32.cont [4/16] 0.0, 128
    %199 = vxpose.xlu0.b32.cont [5/16] 0.0, 128
    %200 = vxpose.xlu0.b32.cont [6/16] 0.0, 128
    %201 = vxpose.xlu0.b32.cont [7/16] 0.0, 128
    %202 = vxpose.xlu0.b32.cont [8/16] 0.0, 128
    %203 = vxpose.xlu0.b32.cont [9/16] 0.0, 128
    %204 = vxpose.xlu0.b32.cont [10/16] 0.0, 128
    %205 = vxpose.xlu0.b32.cont [11/16] 0.0, 128
    %206 = vxpose.xlu0.b32.cont [12/16] 0.0, 128
    %207 = vxpose.xlu0.b32.cont [13/16] 0.0, 128
    %208 = vxpose.xlu0.b32.cont [14/16] 0.0, 128
    %209 = vxpose.xlu0.b32.cont [15/16] 0.0, 128
    %210 = vxpose.xlu0.b32.end [16/16] 0.0, 128
    %v211 = vpop.trf.xlu0
    %v212 = vpop.trf.xlu0
    %v213 = vpop.trf.xlu0
    %v214 = vpop.trf.xlu0
    %v215 = vpop.trf.xlu0
    %v216 = vpop.trf.xlu0
    %v217 = vpop.trf.xlu0
    %v218 = vpop.trf.xlu0
    %v219 = vpop.trf.xlu0
    %v220 = vpop.trf.xlu0
    %v221 = vpop.trf.xlu0
    %v222 = vpop.trf.xlu0
    %v223 = vpop.trf.xlu0
    %v224 = vpop.trf.xlu0
    %v225 = vpop.trf.xlu0
    %v226 = vpop.trf.xlu0
    %vm227 = vcmask 62464
    %228 = vst.msk [vmem:[#allocation2] sm:$0x3f] %vm227, %v211
    // Predicated region
    $region14: #{tpu_custom_call.1} parent=1 // pred_check
      _
    $region15: #{tpu_custom_call.1} parent=1 // pred_check_branch
      %230 = sbr.rel (0) target = $region17
    $region16: #{tpu_custom_call.1} parent=1 // pred_region
      %s232 = ssub.s32 128, 128
      %233 = vsyncadd [#allocation3], %s232
      %s235 = sshll.u32 [#allocation2], 4
      %s236 = int_to_ptr.vmem [resolvable:$true] %s235
      %238 = dma.vmem_to_hbm [thread:$0]  %s236, 128, %s3, [#allocation3]
    $region17: #{tpu_custom_call.1} parent=1 // pred_fallthru
      _
    // Predicated region
    $region18: #{tpu_custom_call.1} parent=1 // pred_check
      _
    $region19: #{tpu_custom_call.1} parent=1 // pred_check_branch
      %240 = sbr.rel (0) target = $region21
    $region20: #{tpu_custom_call.1} parent=1 // pred_region
      %241 = dma.done [#allocation3], 128
    $region21: #{tpu_custom_call.1} parent=1 // pred_fallthru
      _
    %242 = vsyncpa [#allocation3], 1

</llo_original>
